<compile_context>
chip_gen: v7x
topology: tpu7x:2x2x1
jax: 0.10.0
libtpu: 0.0.40
codegen_flags: <defaults>
</compile_context>

<pallas_src>
import functools

import jax
import jax.numpy as jnp
from jax.experimental import pallas as pl
from jax.experimental.pallas import tpu as pltpu


def _conv_bn_silu_kernel(p_ref, w_ref, bias_ref, o_ref, *, tn, slice_w):
    """One (M-tile, C2-tile) block of: out = SiLU( P @ (W*scale) + bias ).

    p_ref:    (TM, K)            im2col patch tile, bf16
    w_ref:    (K, TN) or (K, C2p) BN-scale-folded conv weight, bf16
    bias_ref: (1, TN) or (1, C2p) folded BN bias, f32
    o_ref:    (TM, TN)           bf16 output tile
    """
    if slice_w:
        # Weight/bias are VMEM-resident across the whole grid; pick this
        # block's lane-aligned C2 slice.
        off = pl.multiple_of(pl.program_id(1) * tn, 128)
        w = w_ref[:, pl.ds(off, tn)]
        b = bias_ref[:, pl.ds(off, tn)]
    else:
        w = w_ref[...]
        b = bias_ref[...]
    acc = jnp.dot(p_ref[...], w, preferred_element_type=jnp.float32)
    y = acc + b                                            # f32 epilogue
    # SiLU(y) = y / (1 + exp(-y)); exp + approx reciprocal stay on the EUP slot.
    o_ref[...] = (y * pl.reciprocal(1.0 + jnp.exp(-y), approx=True)).astype(
        o_ref.dtype)


def _im2col(x_nchw, k, s, p):
    """Extract conv patches. Returns P[N*Ho*Wo, C1*k*k] and (Ho, Wo)."""
    n, c1, h, w = x_nchw.shape
    x_pad = jnp.pad(x_nchw, ((0, 0), (0, 0), (p, p), (p, p)))
    ho = (h + 2 * p - k) // s + 1
    wo = (w + 2 * p - k) // s + 1
    taps = []
    for kh in range(k):
        for kw in range(k):
            taps.append(x_pad[:, :, kh:kh + s * ho:s, kw:kw + s * wo:s])
    # [k*k, N, C1, Ho, Wo] -> [N, Ho, Wo, C1, k*k]
    stacked = jnp.stack(taps, axis=0)
    patches = jnp.transpose(stacked, (1, 3, 4, 2, 0))
    # flatten K axis as c1*k*k + kh*k + kw (matches PyTorch weight flatten order)
    patches = patches.reshape(n * ho * wo, c1 * k * k)
    return patches, ho, wo


def _round_up(x, m):
    return ((x + m - 1) // m) * m


def _vmem_config():
    """Generation-aware (tile_budget_bytes, vmem_limit_bytes)."""
    vmem = 64 * 1024 * 1024  # conservative default (v7x-sized)
    try:
        info = pltpu.get_tpu_info()
        for attr in ("vmem_capacity_bytes", "vmem_size_bytes", "vmem_bytes"):
            v = getattr(info, attr, None)
            if isinstance(v, int) and v > 0:
                vmem = v
                break
    except Exception:
        pass
    if vmem >= 96 * 1024 * 1024:
        # v5e / v6e: 128 MiB physical VMEM — use it.
        return 80 * 1024 * 1024, 96 * 1024 * 1024
    # v7x: 64 MiB physical VMEM — leave headroom for internal scratch.
    return 28 * 1024 * 1024, 40 * 1024 * 1024


def _choose_tiles(m, kk, c2_pad, budget):
    """Pick (tm, tn, resident) against the generation VMEM budget."""
    tn = 256 if c2_pad % 256 == 0 else 128
    kk_lane = _round_up(kk, 128)     # lane-padded K (patch tile minor dim)
    kk_sub = _round_up(kk, 16)       # sublane-padded K (bf16 weight major dim)
    w_full = kk_sub * c2_pad * 2     # full folded-weight footprint (bf16)
    resident = (2 * w_full) <= (budget // 4)

    tm = 128
    for cand in (1024, 512, 256, 128):
        w_block = w_full if resident else kk_sub * tn * 2
        bias_block = 8 * (c2_pad if resident else tn) * 4
        need = (2 * cand * kk_lane * 2     # bf16 patch tile, double-buffered
                + 2 * w_block              # weight (count 2 buffers, be safe)
                + 2 * bias_block           # bias
                + 2 * cand * tn * 2)       # bf16 output tile, double-buffered
        if need <= budget:
            tm = cand
            break

    # Megacore guard (v7x has 2 TensorCores): keep >= 2 "parallel" grid steps.
    while m <= tm and tm >= 256 and (c2_pad // tn) < 2:
        tm //= 2
    return tm, tn, resident


@functools.partial(jax.jit, static_argnames=("k", "s", "p", "eps"))
def conv_bn_silu(x, weight, gamma, beta, running_mean, running_var,
                 *, k, s, p, eps=1e-5):
    """Fused Conv2d(bias=False) + BatchNorm2d(eval) + SiLU.

    x:      [N, C1, H, W]  (NCHW, like PyTorch)
    weight: [C2, C1, k, k]
    returns [N, C2, Ho, Wo]  (bf16)
    """
    n, c1, _, _ = x.shape
    c2 = weight.shape[0]

    # --- glue: im2col in bf16 (halves HBM traffic of the patch matrix) ---
    patches, ho, wo = _im2col(x.astype(jnp.bfloat16), k, s, p)
    m, kk = patches.shape

    # --- fold BN (eval) into weight + bias in f32, then cast weight for MXU ---
    scale = (gamma / jnp.sqrt(running_var + eps)).astype(jnp.float32)   # [C2]
    bias = (beta - running_mean * scale).astype(jnp.float32)            # [C2]
    w_mat = weight.reshape(c2, c1 * k * k).T.astype(jnp.float32) * scale[None, :]

    # Lane-dense output: pad C2 up to a multiple of 128 (weight-side only).
    c2_pad = _round_up(c2, 128)
    if c2_pad != c2:
        w_mat = jnp.pad(w_mat, ((0, 0), (0, c2_pad - c2)))
        bias = jnp.pad(bias, ((0, c2_pad - c2),))
    w_mat = w_mat.astype(jnp.bfloat16)                                  # [K, C2p]
    bias = bias.reshape(1, c2_pad)                                      # [1, C2p]

    budget, vmem_limit = _vmem_config()
    tm, tn, resident = _choose_tiles(m, kk, c2_pad, budget)
    grid = (pl.cdiv(m, tm), c2_pad // tn)
    slice_w = resident and (c2_pad // tn > 1)

    if resident:
        w_spec = pl.BlockSpec((kk, c2_pad), lambda i, j: (0, 0))
        b_spec = pl.BlockSpec((1, c2_pad), lambda i, j: (0, 0))
    else:
        w_spec = pl.BlockSpec((kk, tn), lambda i, j: (0, j))
        b_spec = pl.BlockSpec((1, tn), lambda i, j: (0, j))

    m_tiles = pl.cdiv(m, tm)
    w_bytes = kk * c2_pad * 2 * (1 if resident else m_tiles)
    cost = pl.CostEstimate(
        flops=2 * m * kk * c2_pad,
        transcendentals=m * c2_pad,
        bytes_accessed=(m * kk * 2          # bf16 patches
                        + w_bytes           # bf16 folded weight
                        + c2_pad * 4        # bias
                        + m * c2_pad * 2),  # bf16 output
    )

    out = pl.pallas_call(
        functools.partial(_conv_bn_silu_kernel, tn=tn, slice_w=slice_w),
        out_shape=jax.ShapeDtypeStruct((m, c2_pad), jnp.bfloat16),
        grid_spec=pltpu.PrefetchScalarGridSpec(
            num_scalar_prefetch=0,
            grid=grid,
            in_specs=[
                pl.BlockSpec((tm, kk), lambda i, j: (i, 0)),   # patch tile
                w_spec,                                        # folded weight
                b_spec,                                        # folded BN bias
            ],
            out_specs=pl.BlockSpec((tm, tn), lambda i, j: (i, j)),
        ),
        compiler_params=pltpu.CompilerParams(
            dimension_semantics=("parallel", "parallel"),
            vmem_limit_bytes=vmem_limit),
        cost_estimate=cost,
    )(patches, w_mat, bias)

    out = out[:, :c2]                               # drop C2 padding
    out = out.reshape(n, ho, wo, c2)                # [N, Ho, Wo, C2]
    return jnp.transpose(out, (0, 3, 1, 2))         # NCHW, matching PyTorch


def autopad(k, p=None):
    if p is None:
        p = k // 2 if isinstance(k, int) else [x // 2 for x in k]
    return p


if __name__ == "__main__":
    # Small deterministic example: Conv(c1=4, c2=8, k=3, s=1) on [2, 4, 16, 16]
    key = jax.random.PRNGKey(0)
    kx, kw, km, kv = jax.random.split(key, 4)

    N, C1, H, W = 2, 4, 16, 16
    C2, K, S = 8, 3, 1
    P = autopad(K)

    x = jax.random.normal(kx, (N, C1, H, W), dtype=jnp.float32)
    weight = jax.random.normal(kw, (C2, C1, K, K), dtype=jnp.float32) * 0.1
    gamma = jnp.ones((C2,), jnp.float32)
    beta = jnp.zeros((C2,), jnp.float32)
    running_mean = jax.random.normal(km, (C2,), dtype=jnp.float32) * 0.05
    running_var = jnp.abs(jax.random.normal(kv, (C2,), dtype=jnp.float32)) + 1.0

    y = conv_bn_silu(x, weight, gamma, beta, running_mean, running_var,
                     k=K, s=S, p=P)
    y = jax.block_until_ready(y)

    # sanity: reference in plain JAX (f32 conv + BN(eval) + SiLU)
    ref_conv = jax.lax.conv_general_dilated(
        x, weight, window_strides=(S, S), padding=[(P, P), (P, P)],
        dimension_numbers=("NCHW", "OIHW", "NCHW"))
    scale = gamma / jnp.sqrt(running_var + 1e-5)
    bias = beta - running_mean * scale
    ref = ref_conv * scale[None, :, None, None] + bias[None, :, None, None]
    ref = ref * jax.nn.sigmoid(ref)
    assert y.shape == (N, C2, H, W)
    # bf16 MXU inputs + bf16 output (f32 accumulation) -> loosened tolerance
    assert jnp.allclose(y.astype(jnp.float32), ref, atol=5e-2, rtol=5e-2)

    print("KERNEL_OK")
</pallas_src>

<mosaic_0001>
module attributes {stable_mosaic.version = 11 : i64} {
  func.func @_conv_bn_silu_kernel(%arg0: i32, %arg1: i32, %arg2: memref<256x36xbf16, #tpu.memory_space<vmem>>, %arg3: memref<36x128xbf16, #tpu.memory_space<vmem>>, %arg4: memref<1x128xf32, #tpu.memory_space<vmem>>, %arg5: memref<256x128xbf16, #tpu.memory_space<vmem>>) attributes {dimension_semantics = [#tpu.dimension_semantics<parallel>, #tpu.dimension_semantics<parallel>], iteration_bounds = array<i64: 2, 1>, scalar_prefetch = 0 : i64, scratch_operands = 0 : i64, tpu.core_type = #tpu.core_type<tc>, window_params = [{transform_indices = @transform_0, window_bounds = array<i64: 256, 36>}, {pipeline_mode = #tpu.pipeline_mode<synchronous>, transform_indices = @transform_1, window_bounds = array<i64: 36, 128>}, {pipeline_mode = #tpu.pipeline_mode<synchronous>, transform_indices = @transform_2, window_bounds = array<i64: 1, 128>}, {transform_indices = @transform_3, window_bounds = array<i64: 256, 128>}]} {
    %c0 = arith.constant 0 : index
    %c0_0 = arith.constant 0 : index
    %0 = vector.load %arg3[%c0, %c0_0] : memref<36x128xbf16, #tpu.memory_space<vmem>>, vector<36x128xbf16>
    %c0_1 = arith.constant 0 : index
    %c0_2 = arith.constant 0 : index
    %1 = vector.load %arg4[%c0_1, %c0_2] : memref<1x128xf32, #tpu.memory_space<vmem>>, vector<1x128xf32>
    %c0_3 = arith.constant 0 : index
    %c0_4 = arith.constant 0 : index
    %2 = vector.load %arg2[%c0_3, %c0_4] : memref<256x36xbf16, #tpu.memory_space<vmem>>, vector<256x36xbf16>
    %cst = arith.constant dense<0.000000e+00> : vector<256x128xf32>
    %3 = tpu.matmul %2, %0, %cst {dimension_numbers = #tpu.dot_dimension_numbers<[1], [0], [0], [1], [0, 0, 1, 1], [], []>} : vector<256x36xbf16>, vector<36x128xbf16>, vector<256x128xf32> -> vector<256x128xf32>
    %4 = vector.broadcast %1 : vector<1x128xf32> to vector<256x128xf32>
    %5 = arith.addf %3, %4 : vector<256x128xf32>
    %cst_5 = arith.constant 0.000000e+00 : f32
    %6 = vector.broadcast %cst_5 : f32 to vector<256x128xf32>
    %7 = arith.subf %6, %5 : vector<256x128xf32>
    %8 = math.exp %7 : vector<256x128xf32>
    %cst_6 = arith.constant 1.000000e+00 : f32
    %9 = vector.broadcast %cst_6 : f32 to vector<256x128xf32>
    %10 = arith.addf %9, %8 : vector<256x128xf32>
    %11 = tpu.reciprocal %10 {approx = true} : vector<256x128xf32> -> vector<256x128xf32>
    %12 = arith.mulf %5, %11 : vector<256x128xf32>
    %13 = arith.truncf %12 : vector<256x128xf32> to vector<256x128xbf16>
    %c0_7 = arith.constant 0 : index
    %c0_8 = arith.constant 0 : index
    %14 = vector.load %arg5[%c0_7, %c0_8] : memref<256x128xbf16, #tpu.memory_space<vmem>>, vector<256x128xbf16>
    tpu.vector_store %arg5[%c0_7, %c0_8], %13 {strides = array<i32>} : memref<256x128xbf16, #tpu.memory_space<vmem>>, vector<256x128xbf16>,
    return
  }
  func.func @transform_0(%arg0: i32, %arg1: i32) -> (i32, i32) {
    %c0_i32 = arith.constant 0 : i32
    %c0_i32_0 = arith.constant 0 : i32
    return %arg0, %c0_i32 : i32, i32
  }
  func.func @transform_1(%arg0: i32, %arg1: i32) -> (i32, i32) {
    %c0_i32 = arith.constant 0 : i32
    %c0_i32_0 = arith.constant 0 : i32
    %c0_i32_1 = arith.constant 0 : i32
    return %c0_i32, %c0_i32_0 : i32, i32
  }
  func.func @transform_2(%arg0: i32, %arg1: i32) -> (i32, i32) {
    %c0_i32 = arith.constant 0 : i32
    %c0_i32_0 = arith.constant 0 : i32
    %c0_i32_1 = arith.constant 0 : i32
    return %c0_i32, %c0_i32_0 : i32, i32
  }
  func.func @transform_3(%arg0: i32, %arg1: i32) -> (i32, i32) {
    %c0_i32 = arith.constant 0 : i32
    return %arg0, %arg1 : i32, i32
  }
}

</mosaic_0001>

<llo_original>
// kernel: conv_bn_silu.1
$region0: #{conv_bn_silu.1}
  #allocation0 [shape = 'u32[]', space=smem, size = 0x4, offset = 0x4, fixed_abs, tag = 'smem constant byte address 0x4 - core index']
  #allocation1 [shape = 'u32[144,128]{1,0:T(1,128)}', space=vmem, size = 0x12000, scoped, tag = 'internal scratch']
  %s0 = inlined_call_operand.vmem [shape: bf16[512,36], index: 0, kind: input, shape index: {}]
  %s1 = inlined_call_operand.vmem [shape: bf16[36,128], index: 1, kind: input, shape index: {}]
  %s2 = inlined_call_operand.vmem [shape: f32[1,128], index: 2, kind: input, shape index: {}]
  %s3 = inlined_call_operand.vmem [shape: bf16[512,128], index: 3, kind: output, shape index: {}]
  %s4 = sld [smem:[#allocation0]]
  $region45: #{conv_bn_silu.1} parent=0
    _
  %s6 = ssub.s32 1, %s4
  %s7 = scalar_select 0, %s6, %s4
  loop: start=0, step=1, limit=4
  $region2: #{conv_bn_silu.1} parent=0 // loop_pre_header
    _
  $region3: #{conv_bn_silu.1} parent=0 // loop_header
    %s9 = sphi 0, %s13
    %p10 = scmp.ge.s32.totalorder %s9, 4
    %s16 = sphi 0, %s28
    %s17 = sphi 0, %s24
    %s18 = sphi 0, %s16
    %s19 = sphi 0, %s17
    %s20 = sphi 0, %s18
    %s21 = sphi 0, %s19
    %s31 = sphi 0, %s33
    %s34 = sphi 0, %s31
    %s35 = sphi 0, %s34
    %s51 = sphi 0, %s35
    %s55 = sphi 0, %s55
    %s57 = sphi 0, %s55
    %s58 = sphi 0, %s57
    %s72 = sphi 0, %s58
    %s76 = sphi 0, %s76
    %s78 = sphi 0, %s76
    %s79 = sphi 0, %s78
    %s93 = sphi 0, %s79
    %s101 = sphi 0, %s103
    %s104 = sphi 0, %s101
    %s105 = sphi 0, %s104
    %s121 = sphi 0, %s105
  $region4: #{conv_bn_silu.1} parent=0 // loop_header_branch
    %12 = sbr.rel (%p10) target = $region8
  $region5: #{conv_bn_silu.1} parent=0 // loop_body
    %s14 = ssub.s32 %s9, 1
    %s15 = ssub.s32 %s9, 2
    %s22 = sadd.s32 1, %s17
    %p23 = scmp.ge.s32.totalorder %s22, 1
    %s24 = scalar_select %p23, 0, %s22
    %s25 = sadd.s32 1, %s16
    %s26 = scalar_select %p23, %s25, %s16
    %p27 = scmp.ge.s32.totalorder %s26, 2
    %s28 = scalar_select %p27, 0, %s26
    %s29 = ssub.s32 %s16, %s28
    %p30 = scmp.eq.s32.totalorder %s29, 0
    %s32 = sadd.s32 %s31, 1
    %s33 = scalar_select %p30, %s31, %s32
    %p36 = pneg %p30
    %p37 = scmp.eq.s32.totalorder %s9, 1
    %p38 = por %p36, %p37
    %p39 = scmp.ne.s32.totalorder %s31, %s34
    %p40 = scmp.eq.s32.totalorder %s9, 0
    %p41 = por %p39, %p40
    %p42 = scmp.ne.s32.totalorder %s31, %s34
    %p43 = scmp.eq.s32.totalorder %s14, 1
    %p44 = por %p42, %p43
    %p45 = scmp.ne.s32.totalorder %s34, %s35
    %p46 = scmp.eq.s32.totalorder %s14, 0
    %p47 = por %p45, %p46
    %p48 = scmp.ne.s32.totalorder %s34, %s35
    %p49 = scmp.eq.s32.totalorder %s15, 1
    %p50 = por %p48, %p49
    %p52 = scmp.ne.s32.totalorder %s35, %s51
    %p53 = scmp.eq.s32.totalorder %s15, 0
    %p54 = por %p52, %p53
    %s56 = sadd.s32 %s55, 1
    %p59 = scmp.eq.s32.totalorder %s9, 1
    %p60 = scmp.ne.s32.totalorder %s55, %s57
    %p61 = scmp.eq.s32.totalorder %s9, 0
    %p62 = por %p60, %p61
    %p63 = scmp.ne.s32.totalorder %s55, %s57
    %p64 = scmp.eq.s32.totalorder %s14, 1
    %p65 = por %p63, %p64
    %p66 = scmp.ne.s32.totalorder %s57, %s58
    %p67 = scmp.eq.s32.totalorder %s14, 0
    %p68 = por %p66, %p67
    %p69 = scmp.ne.s32.totalorder %s57, %s58
    %p70 = scmp.eq.s32.totalorder %s15, 1
    %p71 = por %p69, %p70
    %p73 = scmp.ne.s32.totalorder %s58, %s72
    %p74 = scmp.eq.s32.totalorder %s15, 0
    %p75 = por %p73, %p74
    %s77 = sadd.s32 %s76, 1
    %p80 = scmp.eq.s32.totalorder %s9, 1
    %p81 = scmp.ne.s32.totalorder %s76, %s78
    %p82 = scmp.eq.s32.totalorder %s9, 0
    %p83 = por %p81, %p82
    %p84 = scmp.ne.s32.totalorder %s76, %s78
    %p85 = scmp.eq.s32.totalorder %s14, 1
    %p86 = por %p84, %p85
    %p87 = scmp.ne.s32.totalorder %s78, %s79
    %p88 = scmp.eq.s32.totalorder %s14, 0
    %p89 = por %p87, %p88
    %p90 = scmp.ne.s32.totalorder %s78, %s79
    %p91 = scmp.eq.s32.totalorder %s15, 1
    %p92 = por %p90, %p91
    %p94 = scmp.ne.s32.totalorder %s79, %s93
    %p95 = scmp.eq.s32.totalorder %s15, 0
    %p96 = por %p94, %p95
    %s97 = ssub.s32 %s16, %s28
    %s98 = ssub.s32 %s17, %s24
    %s99 = sor.u32 %s97, %s98
    %p100 = scmp.eq.s32.totalorder %s99, 0
    %s102 = sadd.s32 %s101, 1
    %s103 = scalar_select %p100, %s101, %s102
    %p106 = pneg %p100
    %p107 = scmp.eq.s32.totalorder %s9, 1
    %p108 = por %p106, %p107
    %p109 = scmp.ne.s32.totalorder %s101, %s104
    %p110 = scmp.eq.s32.totalorder %s9, 0
    %p111 = por %p109, %p110
    %p112 = scmp.ne.s32.totalorder %s101, %s104
    %p113 = scmp.eq.s32.totalorder %s14, 1
    %p114 = por %p112, %p113
    %p115 = scmp.ne.s32.totalorder %s104, %s105
    %p116 = scmp.eq.s32.totalorder %s14, 0
    %p117 = por %p115, %p116
    %p118 = scmp.ne.s32.totalorder %s104, %s105
    %p119 = scmp.eq.s32.totalorder %s15, 1
    %p120 = por %p118, %p119
    %p122 = scmp.ne.s32.totalorder %s105, %s121
    %p123 = scmp.eq.s32.totalorder %s15, 0
    %p124 = por %p122, %p123
    %p125 = scmp.le.s32.totalorder 1, %s9
    %p126 = scmp.lt.s32.totalorder %s9, 3
    %p127 = pnand %p125, %p126
    %p128 = pneg %p127
    // Predicated region
    $region9: #{conv_bn_silu.1} parent=5 // pred_check
      _
    $region10: #{conv_bn_silu.1} parent=5 // pred_check_branch
      %130 = sbr.rel (%p127) target = $region12
    $region11: #{conv_bn_silu.1} parent=5 // pred_region
      %s131 = ssub.s32 %s9, 1
      // Predicated region
      $region13: #{conv_bn_silu.1} parent=11 // pred_check
        %p132 = pneg %p68
      $region14: #{conv_bn_silu.1} parent=11 // pred_check_branch
        %134 = sbr.rel (%p132) target = $region16
      $region15: #{conv_bn_silu.1} parent=11 // pred_region
        _
      $region16: #{conv_bn_silu.1} parent=11 // pred_fallthru
        _
      // Predicated region
      $region17: #{conv_bn_silu.1} parent=11 // pred_check
        %p135 = pneg %p89
      $region18: #{conv_bn_silu.1} parent=11 // pred_check_branch
        %137 = sbr.rel (%p135) target = $region20
      $region19: #{conv_bn_silu.1} parent=11 // pred_region
        _
      $region20: #{conv_bn_silu.1} parent=11 // pred_fallthru
        _
    $region12: #{conv_bn_silu.1} parent=5 // pred_fallthru
      _
    %p138 = scmp.lt.s32.totalorder %s9, 2
    // Predicated region
    $region21: #{conv_bn_silu.1} parent=5 // pred_check
      %p139 = pneg %p138
    $region22: #{conv_bn_silu.1} parent=5 // pred_check_branch
      %141 = sbr.rel (%p139) target = $region24
    $region23: #{conv_bn_silu.1} parent=5 // pred_region
      // Predicated region
      $region25: #{conv_bn_silu.1} parent=23 // pred_check
        %p142 = pneg %p41
      $region26: #{conv_bn_silu.1} parent=23 // pred_check_branch
        %144 = sbr.rel (%p142) target = $region28
      $region27: #{conv_bn_silu.1} parent=23 // pred_region
        %s145 = smul.u32 32, %s16
        %p146 = scmp.lt.s32.totalorder %s145, 63
        %s147 = scalar_select %p146, %s145, 63
        %s148 = smul.addr %s147, 4
        %s149 = scalar_lea.vmem %s0, %s148
        %s150 = smul.u32 32, %s16
      $region28: #{conv_bn_silu.1} parent=23 // pred_fallthru
        _
    $region24: #{conv_bn_silu.1} parent=5 // pred_fallthru
      _
    %p151 = scmp.le.s32.totalorder 1, %s9
    %p152 = scmp.lt.s32.totalorder %s9, 3
    %p153 = pnand %p151, %p152
    %p154 = pneg %p153
    // Predicated region
    $region29: #{conv_bn_silu.1} parent=5 // pred_check
      _
    $region30: #{conv_bn_silu.1} parent=5 // pred_check_branch
      %156 = sbr.rel (%p153) target = $region32
    $region31: #{conv_bn_silu.1} parent=5 // pred_region
      %s157 = ssub.s32 %s9, 1
      %s158 = smul.u32 32, %s18
      %p159 = scmp.lt.s32.totalorder %s158, 63
      %s160 = scalar_select %p159, %s158, 63
      %s161 = smul.addr %s160, 4
      %s162 = scalar_lea.vmem %s0, %s161
      %p163 = pneg %p47
      %p164 = pneg %p44
      %p165 = pneg %p68
      %p166 = pneg %p65
      %p167 = pneg %p89
      %p168 = pneg %p86
      %p169 = pneg %p117
      %p170 = pneg %p114
      %s171 = smul.u32 32, %s18
      %p172 = scmp.lt.s32.totalorder %s171, 63
      %s173 = scalar_select %p172, %s171, 63
      %p174 = scmp.lt.s32.totalorder %s19, 0
      %s175 = scalar_select %p174, %s19, 0
      %s176 = sadd.s32 %s175, %s173
      %s177 = smul.addr %s176, 4
      %s178 = scalar_lea.vmem %s3, %s177
      %s179 = smul.u32 32, %s18
      %p180 = scmp.lt.s32.totalorder %s179, 63
      %s181 = scalar_select %p180, %s179, 63
      %s182 = smul.addr %s181, 4
      %s183 = scalar_lea.vmem %s0, %s182
      %s184 = smul.u32 32, %s18
      %s185 = smul.u32 32, %s18
      %p186 = scmp.lt.s32.totalorder %s185, 63
      %s187 = scalar_select %p186, %s185, 63
      %p188 = scmp.lt.s32.totalorder %s19, 0
      %s189 = scalar_select %p188, %s19, 0
      %s190 = sadd.s32 %s189, %s187
      %s191 = smul.addr %s190, 4
      %s192 = scalar_lea.vmem %s3, %s191
      %s193 = smul.u32 32, %s18
      %v195 = vld [vmem:[%s1] sm:$0xf]
      %v196 = vld [vmem:[%s1 + $0x4] sm:$0xf]
      %v197 = vld [vmem:[%s1 + $0x8] sm:$0xf]
      %v198 = vld [vmem:[%s1 + $0xc] sm:$0xf]
      %v199 = vld [vmem:[%s1 + $0x10] sm:$0x3]
      %v200 = vld [vmem:[%s2] sm:$0x1]
      %v201 = vld [vmem:[%s183] sm:$0xf]
      %v202 = vld [vmem:[%s183 + $0x4] sm:$0xf]
      %v203 = vld [vmem:[%s183 + $0x8] sm:$0xf]
      %v204 = vld [vmem:[%s183 + $0xc] sm:$0xf]
      %v205 = vld [vmem:[%s183 + $0x10] sm:$0xf]
      %v206 = vld [vmem:[%s183 + $0x14] sm:$0xf]
      %v207 = vld [vmem:[%s183 + $0x18] sm:$0xf]
      %v208 = vld [vmem:[%s183 + $0x1c] sm:$0xf]
      %v209 = vld [vmem:[%s183 + $0x20] sm:$0xf]
      %v210 = vld [vmem:[%s183 + $0x24] sm:$0xf]
      %v211 = vld [vmem:[%s183 + $0x28] sm:$0xf]
      %v212 = vld [vmem:[%s183 + $0x2c] sm:$0xf]
      %v213 = vld [vmem:[%s183 + $0x30] sm:$0xf]
      %v214 = vld [vmem:[%s183 + $0x34] sm:$0xf]
      %v215 = vld [vmem:[%s183 + $0x38] sm:$0xf]
      %v216 = vld [vmem:[%s183 + $0x3c] sm:$0xf]
      %v217 = vld [vmem:[%s183 + $0x40] sm:$0xf]
      %v218 = vld [vmem:[%s183 + $0x44] sm:$0xf]
      %v219 = vld [vmem:[%s183 + $0x48] sm:$0xf]
      %v220 = vld [vmem:[%s183 + $0x4c] sm:$0xf]
      %v221 = vld [vmem:[%s183 + $0x50] sm:$0xf]
      %v222 = vld [vmem:[%s183 + $0x54] sm:$0xf]
      %v223 = vld [vmem:[%s183 + $0x58] sm:$0xf]
      %v224 = vld [vmem:[%s183 + $0x5c] sm:$0xf]
      %v225 = vld [vmem:[%s183 + $0x60] sm:$0xf]
      %v226 = vld [vmem:[%s183 + $0x64] sm:$0xf]
      %v227 = vld [vmem:[%s183 + $0x68] sm:$0xf]
      %v228 = vld [vmem:[%s183 + $0x6c] sm:$0xf]
      %v229 = vld [vmem:[%s183 + $0x70] sm:$0xf]
      %v230 = vld [vmem:[%s183 + $0x74] sm:$0xf]
      %v231 = vld [vmem:[%s183 + $0x78] sm:$0xf]
      %v232 = vld [vmem:[%s183 + $0x7c] sm:$0xf]
      %v234 = vlaneseq
      %v235 = vshrl.u32 %v234, 7
      %v236 = vsub.s32 0, %v235
      %v237 = vrot.slane %v200, %v236
      %v271 = vunpack.c.l.b16 %v201
      %v272 = vunpack.c.l.b16 %v202
      %v273 = vunpack.c.l.b16 %v203
      %v274 = vunpack.c.l.b16 %v204
      %v275 = vunpack.c.l.b16 %v205
      %v276 = vunpack.c.l.b16 %v206
      %v277 = vunpack.c.l.b16 %v207
      %v278 = vunpack.c.l.b16 %v208
      %v279 = vunpack.c.l.b16 %v209
      %v280 = vunpack.c.l.b16 %v210
      %v281 = vunpack.c.l.b16 %v211
      %v282 = vunpack.c.l.b16 %v212
      %v283 = vunpack.c.l.b16 %v213
      %v284 = vunpack.c.l.b16 %v214
      %v285 = vunpack.c.l.b16 %v215
      %v286 = vunpack.c.l.b16 %v216
      %v287 = vunpack.c.l.b16 %v217
      %v288 = vunpack.c.l.b16 %v218
      %v289 = vunpack.c.l.b16 %v219
      %v290 = vunpack.c.l.b16 %v220
      %v291 = vunpack.c.l.b16 %v221
      %v292 = vunpack.c.l.b16 %v222
      %v293 = vunpack.c.l.b16 %v223
      %v294 = vunpack.c.l.b16 %v224
      %v295 = vunpack.c.l.b16 %v225
      %v296 = vunpack.c.l.b16 %v226
      %v297 = vunpack.c.l.b16 %v227
      %v298 = vunpack.c.l.b16 %v228
      %v299 = vunpack.c.l.b16 %v229
      %v300 = vunpack.c.l.b16 %v230
      %v301 = vunpack.c.l.b16 %v231
      %v302 = vunpack.c.l.b16 %v232
      %v303 = vpack.c.b16 %v272, %v271
      %v304 = vpack.c.b16 %v274, %v273
      %v305 = vpack.c.b16 %v276, %v275
      %v306 = vpack.c.b16 %v278, %v277
      %v307 = vpack.c.b16 %v280, %v279
      %v308 = vpack.c.b16 %v282, %v281
      %v309 = vpack.c.b16 %v284, %v283
      %v310 = vpack.c.b16 %v286, %v285
      %v311 = vpack.c.b16 %v288, %v287
      %v312 = vpack.c.b16 %v290, %v289
      %v313 = vpack.c.b16 %v292, %v291
      %v314 = vpack.c.b16 %v294, %v293
      %v315 = vpack.c.b16 %v296, %v295
      %v316 = vpack.c.b16 %v298, %v297
      %v317 = vpack.c.b16 %v300, %v299
      %v318 = vpack.c.b16 %v302, %v301
      %v324 = vunpack.c.l.b16 %v195
      %v325 = vunpack.c.l.b16 %v196
      %v326 = vunpack.c.l.b16 %v197
      %v327 = vunpack.c.l.b16 %v198
      %v328 = vunpack.c.l.b16 %v199
      %v329 = vpack.c.b16 %v325, %v324
      %v330 = vpack.c.b16 %v327, %v326
      %v331 = vpack.c.b16 %v328, %v328
      %vm334 = vcmask 293888
      %v336 = vsel %vm334, %v303, 0
      %v339 = vsel %vm334, %v304, 0
      %v342 = vsel %vm334, %v305, 0
      %v345 = vsel %vm334, %v306, 0
      %v348 = vsel %vm334, %v307, 0
      %v351 = vsel %vm334, %v308, 0
      %v354 = vsel %vm334, %v309, 0
      %v357 = vsel %vm334, %v310, 0
      %v360 = vsel %vm334, %v311, 0
      %v363 = vsel %vm334, %v312, 0
      %v366 = vsel %vm334, %v313, 0
      %v369 = vsel %vm334, %v314, 0
      %v372 = vsel %vm334, %v315, 0
      %v375 = vsel %vm334, %v316, 0
      %v378 = vsel %vm334, %v317, 0
      %v381 = vsel %vm334, %v318, 0
      %vm383 = vcmask 1041408
      %v385 = vsel %vm383, %v331, 0
      %387 = vmatprep.subr.bf16.mxu0 0
      %388 = vmatpush1.bf16.msra.mxu0 %v329
      %389 = vmatprep.subr.bf16.mxu0 0
      %390 = vmatpush1.bf16.msra.mxu0 %v330
      %391 = vmatprep.subr.bf16.mxu0 0
      %392 = vmatpush1.bf16.msra.mxu0 %v385
      %393 = vmatprep.subr.bf16.mxu0 0
      %394 = vmatpush1.bf16.msra.mxu0 0
      %395 = vmatprep.subr.bf16.mxu0 0
      %396 = vmatpush1.bf16.msra.mxu0 0
      %397 = vmatprep.subr.bf16.mxu0 0
      %398 = vmatpush1.bf16.msra.mxu0 0
      %399 = vmatprep.subr.bf16.mxu0 0
      %400 = vmatpush1.bf16.msra.mxu0 0
      %401 = vmatprep.subr.bf16.mxu0 0
      %402 = vmatpush1.bf16.msra.mxu0 0
      %403 = vmatprep.subr.bf16.mxu0 0
      %404 = vmatpush1.bf16.msra.mxu0 0
      %405 = vmatprep.subr.bf16.mxu0 0
      %406 = vmatpush1.bf16.msra.mxu0 0
      %407 = vmatprep.subr.bf16.mxu0 0
      %408 = vmatpush1.bf16.msra.mxu0 0
      %409 = vmatprep.subr.bf16.mxu0 0
      %410 = vmatpush1.bf16.msra.mxu0 0
      %411 = vmatprep.subr.bf16.mxu0 0
      %412 = vmatpush1.bf16.msra.mxu0 0
      %413 = vmatprep.subr.bf16.mxu0 0
      %414 = vmatpush1.bf16.msra.mxu0 0
      %415 = vmatprep.subr.bf16.mxu0 0
      %416 = vmatpush1.bf16.msra.mxu0 0
      %417 = vmatprep.subr.bf16.mxu0 0
      %418 = vmatpush1.bf16.msra.mxu0 0
      %419 = vmatprep.mubr.bf16.mxu0 0
      %420 = vmatmul.mubr.bf16.gmra.mrb[0].mxu0 %v336
      %v421 = vpop.f32.mrb[0].mxu0
      %v422 = vadd.f32 %v237, %v421
      %v423 = vpop.f32.mrb[0].mxu0
      %v424 = vpop.f32.mrb[0].mxu0
      %v425 = vadd.f32 %v237, %v424
      %v426 = vpop.f32.mrb[0].mxu0
      %427 = vmatprep.mubr.bf16.mxu0 0
      %428 = vmatmul.mubr.bf16.gmra.mrb[0].mxu0 %v339
      %v429 = vpop.f32.mrb[0].mxu0
      %v430 = vadd.f32 %v237, %v429
      %v431 = vpop.f32.mrb[0].mxu0
      %v432 = vpop.f32.mrb[0].mxu0
      %v433 = vadd.f32 %v237, %v432
      %v434 = vpop.f32.mrb[0].mxu0
      %435 = vmatprep.mubr.bf16.mxu0 0
      %436 = vmatmul.mubr.bf16.gmra.mrb[0].mxu0 %v342
      %v437 = vpop.f32.mrb[0].mxu0
      %v438 = vadd.f32 %v237, %v437
      %v439 = vpop.f32.mrb[0].mxu0
      %v440 = vpop.f32.mrb[0].mxu0
      %v441 = vadd.f32 %v237, %v440
      %v442 = vpop.f32.mrb[0].mxu0
      %443 = vmatprep.mubr.bf16.mxu0 0
      %444 = vmatmul.mubr.bf16.gmra.mrb[0].mxu0 %v345
      %v445 = vpop.f32.mrb[0].mxu0
      %v446 = vadd.f32 %v237, %v445
      %v447 = vpop.f32.mrb[0].mxu0
      %v448 = vpop.f32.mrb[0].mxu0
      %v449 = vadd.f32 %v237, %v448
      %v450 = vpop.f32.mrb[0].mxu0
      %451 = vmatprep.mubr.bf16.mxu0 0
      %452 = vmatmul.mubr.bf16.gmra.mrb[0].mxu0 %v348
      %v453 = vpop.f32.mrb[0].mxu0
      %v454 = vadd.f32 %v237, %v453
      %v455 = vpop.f32.mrb[0].mxu0
      %v456 = vpop.f32.mrb[0].mxu0
      %v457 = vadd.f32 %v237, %v456
      %v458 = vpop.f32.mrb[0].mxu0
      %459 = vmatprep.mubr.bf16.mxu0 0
      %460 = vmatmul.mubr.bf16.gmra.mrb[0].mxu0 %v351
      %v461 = vpop.f32.mrb[0].mxu0
      %v462 = vadd.f32 %v237, %v461
      %v463 = vpop.f32.mrb[0].mxu0
      %v464 = vpop.f32.mrb[0].mxu0
      %v465 = vadd.f32 %v237, %v464
      %v466 = vpop.f32.mrb[0].mxu0
      %467 = vmatprep.mubr.bf16.mxu0 0
      %468 = vmatmul.mubr.bf16.gmra.mrb[0].mxu0 %v354
      %v469 = vpop.f32.mrb[0].mxu0
      %v470 = vadd.f32 %v237, %v469
      %v471 = vpop.f32.mrb[0].mxu0
      %v472 = vpop.f32.mrb[0].mxu0
      %v473 = vadd.f32 %v237, %v472
      %v474 = vpop.f32.mrb[0].mxu0
      %475 = vmatprep.mubr.bf16.mxu0 0
      %476 = vmatmul.mubr.bf16.gmra.mrb[0].mxu0 %v357
      %v477 = vpop.f32.mrb[0].mxu0
      %v478 = vadd.f32 %v237, %v477
      %v479 = vpop.f32.mrb[0].mxu0
      %v480 = vpop.f32.mrb[0].mxu0
      %v481 = vadd.f32 %v237, %v480
      %v482 = vpop.f32.mrb[0].mxu0
      %483 = vmatprep.mubr.bf16.mxu0 0
      %484 = vmatmul.mubr.bf16.gmra.mrb[0].mxu0 %v360
      %v485 = vpop.f32.mrb[0].mxu0
      %v486 = vadd.f32 %v237, %v485
      %v487 = vpop.f32.mrb[0].mxu0
      %v488 = vpop.f32.mrb[0].mxu0
      %v489 = vadd.f32 %v237, %v488
      %v490 = vpop.f32.mrb[0].mxu0
      %491 = vmatprep.mubr.bf16.mxu0 0
      %492 = vmatmul.mubr.bf16.gmra.mrb[0].mxu0 %v363
      %v493 = vpop.f32.mrb[0].mxu0
      %v494 = vadd.f32 %v237, %v493
      %v495 = vpop.f32.mrb[0].mxu0
      %v496 = vpop.f32.mrb[0].mxu0
      %v497 = vadd.f32 %v237, %v496
      %v498 = vpop.f32.mrb[0].mxu0
      %499 = vmatprep.mubr.bf16.mxu0 0
      %500 = vmatmul.mubr.bf16.gmra.mrb[0].mxu0 %v366
      %v501 = vpop.f32.mrb[0].mxu0
      %v502 = vadd.f32 %v237, %v501
      %v503 = vpop.f32.mrb[0].mxu0
      %v504 = vpop.f32.mrb[0].mxu0
      %v505 = vadd.f32 %v237, %v504
      %v506 = vpop.f32.mrb[0].mxu0
      %507 = vmatprep.mubr.bf16.mxu0 0
      %508 = vmatmul.mubr.bf16.gmra.mrb[0].mxu0 %v369
      %v509 = vpop.f32.mrb[0].mxu0
      %v510 = vadd.f32 %v237, %v509
      %v511 = vpop.f32.mrb[0].mxu0
      %v512 = vpop.f32.mrb[0].mxu0
      %v513 = vadd.f32 %v237, %v512
      %v514 = vpop.f32.mrb[0].mxu0
      %515 = vmatprep.mubr.bf16.mxu0 0
      %516 = vmatmul.mubr.bf16.gmra.mrb[0].mxu0 %v372
      %v517 = vpop.f32.mrb[0].mxu0
      %v518 = vadd.f32 %v237, %v517
      %v519 = vpop.f32.mrb[0].mxu0
      %v520 = vpop.f32.mrb[0].mxu0
      %v521 = vadd.f32 %v237, %v520
      %v522 = vpop.f32.mrb[0].mxu0
      %523 = vmatprep.mubr.bf16.mxu0 0
      %524 = vmatmul.mubr.bf16.gmra.mrb[0].mxu0 %v375
      %v525 = vpop.f32.mrb[0].mxu0
      %v526 = vadd.f32 %v237, %v525
      %v527 = vpop.f32.mrb[0].mxu0
      %v528 = vpop.f32.mrb[0].mxu0
      %v529 = vadd.f32 %v237, %v528
      %v530 = vpop.f32.mrb[0].mxu0
      %531 = vmatprep.mubr.bf16.mxu0 0
      %532 = vmatmul.mubr.bf16.gmra.mrb[0].mxu0 %v378
      %v533 = vpop.f32.mrb[0].mxu0
      %v534 = vadd.f32 %v237, %v533
      %v535 = vpop.f32.mrb[0].mxu0
      %v536 = vpop.f32.mrb[0].mxu0
      %v537 = vadd.f32 %v237, %v536
      %v538 = vpop.f32.mrb[0].mxu0
      %539 = vmatprep.mubr.bf16.mxu0 0
      %540 = vmatmul.mubr.bf16.gmra.mrb[0].mxu0 %v381
      %v541 = vpop.f32.mrb[0].mxu0
      %v542 = vadd.f32 %v237, %v541
      %v543 = vpop.f32.mrb[0].mxu0
      %v544 = vpop.f32.mrb[0].mxu0
      %v545 = vadd.f32 %v237, %v544
      %v546 = vpop.f32.mrb[0].mxu0
      %547 = vdwg.mxu0
      %v548 = vsub.f32 0.0, %v422
      %v549 = vsub.f32 0.0, %v425
      %v550 = vsub.f32 0.0, %v430
      %v551 = vsub.f32 0.0, %v433
      %v552 = vsub.f32 0.0, %v438
      %v553 = vsub.f32 0.0, %v441
      %v554 = vsub.f32 0.0, %v446
      %v555 = vsub.f32 0.0, %v449
      %v556 = vsub.f32 0.0, %v454
      %v557 = vsub.f32 0.0, %v457
      %v558 = vsub.f32 0.0, %v462
      %v559 = vsub.f32 0.0, %v465
      %v560 = vsub.f32 0.0, %v470
      %v561 = vsub.f32 0.0, %v473
      %v562 = vsub.f32 0.0, %v478
      %v563 = vsub.f32 0.0, %v481
      %v564 = vsub.f32 0.0, %v486
      %v565 = vsub.f32 0.0, %v489
      %v566 = vsub.f32 0.0, %v494
      %v567 = vsub.f32 0.0, %v497
      %v568 = vsub.f32 0.0, %v502
      %v569 = vsub.f32 0.0, %v505
      %v570 = vsub.f32 0.0, %v510
      %v571 = vsub.f32 0.0, %v513
      %v572 = vsub.f32 0.0, %v518
      %v573 = vsub.f32 0.0, %v521
      %v574 = vsub.f32 0.0, %v526
      %v575 = vsub.f32 0.0, %v529
      %v576 = vsub.f32 0.0, %v534
      %v577 = vsub.f32 0.0, %v537
      %v578 = vsub.f32 0.0, %v542
      %v579 = vsub.f32 0.0, %v545
      %v580 = vmul.f32 %v548, 1.442695
      %v581 = vpow.pop %v580
      %v582 = vmul.f32 %v549, 1.442695
      %v583 = vpow.pop %v582
      %v584 = vmul.f32 %v550, 1.442695
      %v585 = vpow.pop %v584
      %v586 = vmul.f32 %v551, 1.442695
      %v587 = vpow.pop %v586
      %v588 = vmul.f32 %v552, 1.442695
      %v589 = vpow.pop %v588
      %v590 = vmul.f32 %v553, 1.442695
      %v591 = vpow.pop %v590
      %v592 = vmul.f32 %v554, 1.442695
      %v593 = vpow.pop %v592
      %v594 = vmul.f32 %v555, 1.442695
      %v595 = vpow.pop %v594
      %v596 = vmul.f32 %v556, 1.442695
      %v597 = vpow.pop %v596
      %v598 = vmul.f32 %v557, 1.442695
      %v599 = vpow.pop %v598
      %v600 = vmul.f32 %v558, 1.442695
      %v601 = vpow.pop %v600
      %v602 = vmul.f32 %v559, 1.442695
      %v603 = vpow.pop %v602
      %v604 = vmul.f32 %v560, 1.442695
      %v605 = vpow.pop %v604
      %v606 = vmul.f32 %v561, 1.442695
      %v607 = vpow.pop %v606
      %v608 = vmul.f32 %v562, 1.442695
      %v609 = vpow.pop %v608
      %v610 = vmul.f32 %v563, 1.442695
      %v611 = vpow.pop %v610
      %v612 = vmul.f32 %v564, 1.442695
      %v613 = vpow.pop %v612
      %v614 = vmul.f32 %v565, 1.442695
      %v615 = vpow.pop %v614
      %v616 = vmul.f32 %v566, 1.442695
      %v617 = vpow.pop %v616
      %v618 = vmul.f32 %v567, 1.442695
      %v619 = vpow.pop %v618
      %v620 = vmul.f32 %v568, 1.442695
      %v621 = vpow.pop %v620
      %v622 = vmul.f32 %v569, 1.442695
      %v623 = vpow.pop %v622
      %v624 = vmul.f32 %v570, 1.442695
      %v625 = vpow.pop %v624
      %v626 = vmul.f32 %v571, 1.442695
      %v627 = vpow.pop %v626
      %v628 = vmul.f32 %v572, 1.442695
      %v629 = vpow.pop %v628
      %v630 = vmul.f32 %v573, 1.442695
      %v631 = vpow.pop %v630
      %v632 = vmul.f32 %v574, 1.442695
      %v633 = vpow.pop %v632
      %v634 = vmul.f32 %v575, 1.442695
      %v635 = vpow.pop %v634
      %v636 = vmul.f32 %v576, 1.442695
      %v637 = vpow.pop %v636
      %v638 = vmul.f32 %v577, 1.442695
      %v639 = vpow.pop %v638
      %v640 = vmul.f32 %v578, 1.442695
      %v641 = vpow.pop %v640
      %v642 = vmul.f32 %v579, 1.442695
      %v643 = vpow.pop %v642
      %v644 = vadd.f32 %v581, 1.0
      %v645 = vadd.f32 %v583, 1.0
      %v646 = vadd.f32 %v585, 1.0
      %v647 = vadd.f32 %v587, 1.0
      %v648 = vadd.f32 %v589, 1.0
      %v649 = vadd.f32 %v591, 1.0
      %v650 = vadd.f32 %v593, 1.0
      %v651 = vadd.f32 %v595, 1.0
      %v652 = vadd.f32 %v597, 1.0
      %v653 = vadd.f32 %v599, 1.0
      %v654 = vadd.f32 %v601, 1.0
      %v655 = vadd.f32 %v603, 1.0
      %v656 = vadd.f32 %v605, 1.0
      %v657 = vadd.f32 %v607, 1.0
      %v658 = vadd.f32 %v609, 1.0
      %v659 = vadd.f32 %v611, 1.0
      %v660 = vadd.f32 %v613, 1.0
      %v661 = vadd.f32 %v615, 1.0
      %v662 = vadd.f32 %v617, 1.0
      %v663 = vadd.f32 %v619, 1.0
      %v664 = vadd.f32 %v621, 1.0
      %v665 = vadd.f32 %v623, 1.0
      %v666 = vadd.f32 %v625, 1.0
      %v667 = vadd.f32 %v627, 1.0
      %v668 = vadd.f32 %v629, 1.0
      %v669 = vadd.f32 %v631, 1.0
      %v670 = vadd.f32 %v633, 1.0
      %v671 = vadd.f32 %v635, 1.0
      %v672 = vadd.f32 %v637, 1.0
      %v673 = vadd.f32 %v639, 1.0
      %v674 = vadd.f32 %v641, 1.0
      %v675 = vadd.f32 %v643, 1.0
      %v676 = vrcp.pop %v644
      %v677 = vrcp.pop %v645
      %v678 = vrcp.pop %v646
      %v679 = vrcp.pop %v647
      %v680 = vrcp.pop %v648
      %v681 = vrcp.pop %v649
      %v682 = vrcp.pop %v650
      %v683 = vrcp.pop %v651
      %v684 = vrcp.pop %v652
      %v685 = vrcp.pop %v653
      %v686 = vrcp.pop %v654
      %v687 = vrcp.pop %v655
      %v688 = vrcp.pop %v656
      %v689 = vrcp.pop %v657
      %v690 = vrcp.pop %v658
      %v691 = vrcp.pop %v659
      %v692 = vrcp.pop %v660
      %v693 = vrcp.pop %v661
      %v694 = vrcp.pop %v662
      %v695 = vrcp.pop %v663
      %v696 = vrcp.pop %v664
      %v697 = vrcp.pop %v665
      %v698 = vrcp.pop %v666
      %v699 = vrcp.pop %v667
      %v700 = vrcp.pop %v668
      %v701 = vrcp.pop %v669
      %v702 = vrcp.pop %v670
      %v703 = vrcp.pop %v671
      %v704 = vrcp.pop %v672
      %v705 = vrcp.pop %v673
      %v706 = vrcp.pop %v674
      %v707 = vrcp.pop %v675
      %v708 = vmul.f32 %v422, %v676
      %v709 = vmul.f32 %v425, %v677
      %v710 = vmul.f32 %v430, %v678
      %v711 = vmul.f32 %v433, %v679
      %v712 = vmul.f32 %v438, %v680
      %v713 = vmul.f32 %v441, %v681
      %v714 = vmul.f32 %v446, %v682
      %v715 = vmul.f32 %v449, %v683
      %v716 = vmul.f32 %v454, %v684
      %v717 = vmul.f32 %v457, %v685
      %v718 = vmul.f32 %v462, %v686
      %v719 = vmul.f32 %v465, %v687
      %v720 = vmul.f32 %v470, %v688
      %v721 = vmul.f32 %v473, %v689
      %v722 = vmul.f32 %v478, %v690
      %v723 = vmul.f32 %v481, %v691
      %v724 = vmul.f32 %v486, %v692
      %v725 = vmul.f32 %v489, %v693
      %v726 = vmul.f32 %v494, %v694
      %v727 = vmul.f32 %v497, %v695
      %v728 = vmul.f32 %v502, %v696
      %v729 = vmul.f32 %v505, %v697
      %v730 = vmul.f32 %v510, %v698
      %v731 = vmul.f32 %v513, %v699
      %v732 = vmul.f32 %v518, %v700
      %v733 = vmul.f32 %v521, %v701
      %v734 = vmul.f32 %v526, %v702
      %v735 = vmul.f32 %v529, %v703
      %v736 = vmul.f32 %v534, %v704
      %v737 = vmul.f32 %v537, %v705
      %v738 = vmul.f32 %v542, %v706
      %v739 = vmul.f32 %v545, %v707
      %v740 = vpack.c.bf16 %v709, %v708
      %v741 = vpack.c.bf16 %v711, %v710
      %v742 = vpack.c.bf16 %v713, %v712
      %v743 = vpack.c.bf16 %v715, %v714
      %v744 = vpack.c.bf16 %v717, %v716
      %v745 = vpack.c.bf16 %v719, %v718
      %v746 = vpack.c.bf16 %v721, %v720
      %v747 = vpack.c.bf16 %v723, %v722
      %v748 = vpack.c.bf16 %v725, %v724
      %v749 = vpack.c.bf16 %v727, %v726
      %v750 = vpack.c.bf16 %v729, %v728
      %v751 = vpack.c.bf16 %v731, %v730
      %v752 = vpack.c.bf16 %v733, %v732
      %v753 = vpack.c.bf16 %v735, %v734
      %v754 = vpack.c.bf16 %v737, %v736
      %v755 = vpack.c.bf16 %v739, %v738
      %v772 = vunpack.c.l.b16 %v740
      %v773 = vunpack.c.h.b16 %v740
      %v774 = vunpack.c.l.b16 %v741
      %v775 = vunpack.c.h.b16 %v741
      %v776 = vunpack.c.l.b16 %v742
      %v777 = vunpack.c.h.b16 %v742
      %v778 = vunpack.c.l.b16 %v743
      %v779 = vunpack.c.h.b16 %v743
      %v780 = vunpack.c.l.b16 %v744
      %v781 = vunpack.c.h.b16 %v744
      %v782 = vunpack.c.l.b16 %v745
      %v783 = vunpack.c.h.b16 %v745
      %v784 = vunpack.c.l.b16 %v746
      %v785 = vunpack.c.h.b16 %v746
      %v786 = vunpack.c.l.b16 %v747
      %v787 = vunpack.c.h.b16 %v747
      %v788 = vunpack.c.l.b16 %v748
      %v789 = vunpack.c.h.b16 %v748
      %v790 = vunpack.c.l.b16 %v749
      %v791 = vunpack.c.h.b16 %v749
      %v792 = vunpack.c.l.b16 %v750
      %v793 = vunpack.c.h.b16 %v750
      %v794 = vunpack.c.l.b16 %v751
      %v795 = vunpack.c.h.b16 %v751
      %v796 = vunpack.c.l.b16 %v752
      %v797 = vunpack.c.h.b16 %v752
      %v798 = vunpack.c.l.b16 %v753
      %v799 = vunpack.c.h.b16 %v753
      %v800 = vunpack.c.l.b16 %v754
      %v801 = vunpack.c.h.b16 %v754
      %v802 = vunpack.c.l.b16 %v755
      %v803 = vunpack.c.h.b16 %v755
      %v804 = vpack.c.b16 %v772, %v772
      %v805 = vpack.c.b16 %v773, %v773
      %v806 = vpack.c.b16 %v774, %v774
      %v807 = vpack.c.b16 %v775, %v775
      %v808 = vpack.c.b16 %v776, %v776
      %v809 = vpack.c.b16 %v777, %v777
      %v810 = vpack.c.b16 %v778, %v778
      %v811 = vpack.c.b16 %v779, %v779
      %v812 = vpack.c.b16 %v780, %v780
      %v813 = vpack.c.b16 %v781, %v781
      %v814 = vpack.c.b16 %v782, %v782
      %v815 = vpack.c.b16 %v783, %v783
      %v816 = vpack.c.b16 %v784, %v784
      %v817 = vpack.c.b16 %v785, %v785
      %v818 = vpack.c.b16 %v786, %v786
      %v819 = vpack.c.b16 %v787, %v787
      %v820 = vpack.c.b16 %v788, %v788
      %v821 = vpack.c.b16 %v789, %v789
      %v822 = vpack.c.b16 %v790, %v790
      %v823 = vpack.c.b16 %v791, %v791
      %v824 = vpack.c.b16 %v792, %v792
      %v825 = vpack.c.b16 %v793, %v793
      %v826 = vpack.c.b16 %v794, %v794
      %v827 = vpack.c.b16 %v795, %v795
      %v828 = vpack.c.b16 %v796, %v796
      %v829 = vpack.c.b16 %v797, %v797
      %v830 = vpack.c.b16 %v798, %v798
      %v831 = vpack.c.b16 %v799, %v799
      %v832 = vpack.c.b16 %v800, %v800
      %v833 = vpack.c.b16 %v801, %v801
      %v834 = vpack.c.b16 %v802, %v802
      %v835 = vpack.c.b16 %v803, %v803
      %868 = vst [vmem:[%s192] sm:$0xf] %v804
      %869 = vst [vmem:[%s192 + $0x4] sm:$0xf] %v805
      %870 = vst [vmem:[%s192 + $0x8] sm:$0xf] %v806
      %871 = vst [vmem:[%s192 + $0xc] sm:$0xf] %v807
      %872 = vst [vmem:[%s192 + $0x10] sm:$0xf] %v808
      %873 = vst [vmem:[%s192 + $0x14] sm:$0xf] %v809
      %874 = vst [vmem:[%s192 + $0x18] sm:$0xf] %v810
      %875 = vst [vmem:[%s192 + $0x1c] sm:$0xf] %v811
      %876 = vst [vmem:[%s192 + $0x20] sm:$0xf] %v812
      %877 = vst [vmem:[%s192 + $0x24] sm:$0xf] %v813
      %878 = vst [vmem:[%s192 + $0x28] sm:$0xf] %v814
      %879 = vst [vmem:[%s192 + $0x2c] sm:$0xf] %v815
      %880 = vst [vmem:[%s192 + $0x30] sm:$0xf] %v816
      %881 = vst [vmem:[%s192 + $0x34] sm:$0xf] %v817
      %882 = vst [vmem:[%s192 + $0x38] sm:$0xf] %v818
      %883 = vst [vmem:[%s192 + $0x3c] sm:$0xf] %v819
      %884 = vst [vmem:[%s192 + $0x40] sm:$0xf] %v820
      %885 = vst [vmem:[%s192 + $0x44] sm:$0xf] %v821
      %886 = vst [vmem:[%s192 + $0x48] sm:$0xf] %v822
      %887 = vst [vmem:[%s192 + $0x4c] sm:$0xf] %v823
      %888 = vst [vmem:[%s192 + $0x50] sm:$0xf] %v824
      %889 = vst [vmem:[%s192 + $0x54] sm:$0xf] %v825
      %890 = vst [vmem:[%s192 + $0x58] sm:$0xf] %v826
      %891 = vst [vmem:[%s192 + $0x5c] sm:$0xf] %v827
      %892 = vst [vmem:[%s192 + $0x60] sm:$0xf] %v828
      %893 = vst [vmem:[%s192 + $0x64] sm:$0xf] %v829
      %894 = vst [vmem:[%s192 + $0x68] sm:$0xf] %v830
      %895 = vst [vmem:[%s192 + $0x6c] sm:$0xf] %v831
      %896 = vst [vmem:[%s192 + $0x70] sm:$0xf] %v832
      %897 = vst [vmem:[%s192 + $0x74] sm:$0xf] %v833
      %898 = vst [vmem:[%s192 + $0x78] sm:$0xf] %v834
      %899 = vst [vmem:[%s192 + $0x7c] sm:$0xf] %v835
      %s900 = smul.u32 32, %s18
      %p901 = scmp.lt.s32.totalorder %s900, 63
      %s902 = scalar_select %p901, %s900, 63
      %p903 = scmp.lt.s32.totalorder %s19, 0
      %s904 = scalar_select %p903, %s19, 0
      %s905 = sadd.s32 %s904, %s902
      %s906 = smul.addr %s905, 4
      %s907 = scalar_lea.vmem %s3, %s906
      // Predicated region
      $region33: #{conv_bn_silu.1} parent=31 // pred_check
        %p908 = pneg %p114
      $region34: #{conv_bn_silu.1} parent=31 // pred_check_branch
        %910 = sbr.rel (%p908) target = $region36
      $region35: #{conv_bn_silu.1} parent=31 // pred_region
        %s911 = smul.u32 32, %s18
      $region36: #{conv_bn_silu.1} parent=31 // pred_fallthru
        _
    $region32: #{conv_bn_silu.1} parent=5 // pred_fallthru
      _
    %p912 = scmp.le.s32.totalorder 2, %s9
    // Predicated region
    $region37: #{conv_bn_silu.1} parent=5 // pred_check
      %p913 = pneg %p912
    $region38: #{conv_bn_silu.1} parent=5 // pred_check_branch
      %915 = sbr.rel (%p913) target = $region40
    $region39: #{conv_bn_silu.1} parent=5 // pred_region
      %s916 = ssub.s32 %s9, 2
      // Predicated region
      $region41: #{conv_bn_silu.1} parent=39 // pred_check
        %p917 = pneg %p120
      $region42: #{conv_bn_silu.1} parent=39 // pred_check_branch
        %919 = sbr.rel (%p917) target = $region44
      $region43: #{conv_bn_silu.1} parent=39 // pred_region
        %s920 = smul.u32 32, %s20
        %p921 = scmp.lt.s32.totalorder %s920, 63
        %s922 = scalar_select %p921, %s920, 63
        %p923 = scmp.lt.s32.totalorder %s21, 0
        %s924 = scalar_select %p923, %s21, 0
        %s925 = sadd.s32 %s924, %s922
        %s926 = smul.addr %s925, 4
        %s927 = scalar_lea.vmem %s3, %s926
      $region44: #{conv_bn_silu.1} parent=39 // pred_fallthru
        _
    $region40: #{conv_bn_silu.1} parent=5 // pred_fallthru
      _
  $region6: #{conv_bn_silu.1} parent=0 // loop_footer
    %s13 = sadd.s32 1, %s9
  $region7: #{conv_bn_silu.1} parent=0 // loop_footer_branch
    %8 = sbr.rel target = $region3
  $region8: #{conv_bn_silu.1} parent=0 // loop_exit
    _

</llo_original>
